<compile_context>
chip_gen: v7x
topology: tpu7x:2x2x1
jax: 0.10.0
libtpu: 0.0.40
codegen_flags: <defaults>
</compile_context>

<pallas_src>
import functools

import jax
import jax.numpy as jnp
from jax.experimental import pallas as pl
from jax.experimental.pallas import tpu as pltpu

_LANES = 128
_SUBLANES = 8
_MIN_CHUNK = _LANES * _SUBLANES        # 1024 elements = one full f32 vreg
_MAX_BLOCK_ROWS = 512                  # 512x128 f32 block = 256 KiB
                                       # 7 arrays x 2 buffers x 256 KiB ~= 3.5 MiB
                                       # -> fits every generation's VMEM (incl. v7x)


def _dpo_kernel(pc_ref, pr_ref, rc_ref, rr_ref,
                loss_ref, chosen_rw_ref, rejected_rw_ref, *, beta):
    # Cast on load; all arithmetic in f32 (v5e VPU/EUP have no bf16 path).
    pc = pc_ref[...].astype(jnp.float32)
    pr = pr_ref[...].astype(jnp.float32)
    rc = rc_ref[...].astype(jnp.float32)
    rr = rr_ref[...].astype(jnp.float32)

    pi_logratios = pc - pr
    ref_logratios = rc - rr
    x = beta * (pi_logratios - ref_logratios)

    # Numerically stable logsigmoid(x) = min(x, 0) - log1p(exp(-|x|))
    # (matches torch.nn.functional.logsigmoid).
    logsig = jnp.minimum(x, 0.0) - jnp.log1p(jnp.exp(-jnp.abs(x)))

    # Cast on store: outputs carry the caller's dtype.
    loss_ref[...] = (-logsig).astype(loss_ref.dtype)
    chosen_rw_ref[...] = (pc - rc).astype(chosen_rw_ref.dtype)    # .detach() is fwd no-op
    rejected_rw_ref[...] = (pr - rr).astype(rejected_rw_ref.dtype)


def dpo_loss(policy_chosen_logps,
             policy_rejected_logps,
             reference_chosen_logps,
             reference_rejected_logps,
             beta: float = 0.1,
             label_smoothing: float = 0.0):
    """Pallas DPO loss. Returns (losses, chosen_rewards, rejected_rewards),
    each of shape (batch,) in the input dtype."""
    # NOTE: the reference module stores label_smoothing but does not use it in
    # its forward pass; we mirror that exactly.
    del label_smoothing

    b = policy_chosen_logps.shape[0]
    dtype = policy_chosen_logps.dtype

    # Pad batch to a multiple of 1024 so the repacked (rows, 128) layout has
    # rows % 8 == 0, then pick a row-block size.
    b_pad = -(-b // _MIN_CHUNK) * _MIN_CHUNK
    rows = b_pad // _LANES                       # multiple of 8
    block_rows = rows if rows <= _MAX_BLOCK_ROWS else _MAX_BLOCK_ROWS
    grid = (pl.cdiv(rows, block_rows),)

    def pack(x):
        x = x.reshape(-1)
        if b_pad != b:
            x = jnp.pad(x, (0, b_pad - b))       # zero-pad; padded lanes sliced off below
        return x.reshape(rows, _LANES)           # free reshape of contiguous data

    inputs = (
        pack(policy_chosen_logps),
        pack(policy_rejected_logps),
        pack(reference_chosen_logps),
        pack(reference_rejected_logps),
    )

    spec = pl.BlockSpec((block_rows, _LANES), lambda i: (i, 0))
    out_shape = tuple(jax.ShapeDtypeStruct((rows, _LANES), dtype) for _ in range(3))

    loss, chosen_rw, rejected_rw = pl.pallas_call(
        functools.partial(_dpo_kernel, beta=float(beta)),
        grid=grid,
        in_specs=[spec] * 4,
        out_specs=(spec, spec, spec),
        out_shape=out_shape,
        compiler_params=pltpu.CompilerParams(
            dimension_semantics=("parallel",)),   # megacore sharding on v7x; harmless elsewhere
    )(*inputs)

    def unpack(y):
        return y.reshape(b_pad)[:b]

    return unpack(loss), unpack(chosen_rw), unpack(rejected_rw)


def _reference_dpo(pc, pr, rc, rr, beta=0.1):
    x = beta * ((pc - pr) - (rc - rr))
    loss = -(jnp.minimum(x, 0.0) - jnp.log1p(jnp.exp(-jnp.abs(x))))
    return loss, pc - rc, pr - rr


if __name__ == "__main__":
    key = jax.random.PRNGKey(0)

    def make_inputs(batch, key):
        k1, k2, k3, k4 = jax.random.split(key, 4)
        # Log-probs are negative; scale to plausible magnitudes.
        return (
            -jnp.abs(jax.random.normal(k1, (batch,), jnp.float32)) * 5.0,
            -jnp.abs(jax.random.normal(k2, (batch,), jnp.float32)) * 5.0,
            -jnp.abs(jax.random.normal(k3, (batch,), jnp.float32)) * 5.0,
            -jnp.abs(jax.random.normal(k4, (batch,), jnp.float32)) * 5.0,
        )

    # Primary small-shape check (batch = 8), plus a non-aligned batch to
    # exercise the padding path.
    for batch, sub in ((8, 0), (1000, 1)):
        pc, pr, rc, rr = make_inputs(batch, jax.random.fold_in(key, sub))

        loss, chosen_rw, rejected_rw = dpo_loss(pc, pr, rc, rr,
                                                beta=0.1, label_smoothing=0.0)
        jax.block_until_ready((loss, chosen_rw, rejected_rw))

        ref_loss, ref_crw, ref_rrw = _reference_dpo(pc, pr, rc, rr, beta=0.1)
        assert loss.shape == (batch,) and loss.dtype == pc.dtype
        assert jnp.allclose(loss, ref_loss, atol=1e-6), (loss, ref_loss)
        assert jnp.allclose(chosen_rw, ref_crw, atol=1e-6)
        assert jnp.allclose(rejected_rw, ref_rrw, atol=1e-6)

    print("KERNEL_OK")
</pallas_src>

<mosaic_0001>
module attributes {stable_mosaic.version = 11 : i64} {
  func.func @_dpo_kernel(%arg0: i32, %arg1: memref<8x128xf32, #tpu.memory_space<vmem>>, %arg2: memref<8x128xf32, #tpu.memory_space<vmem>>, %arg3: memref<8x128xf32, #tpu.memory_space<vmem>>, %arg4: memref<8x128xf32, #tpu.memory_space<vmem>>, %arg5: memref<8x128xf32, #tpu.memory_space<vmem>>, %arg6: memref<8x128xf32, #tpu.memory_space<vmem>>, %arg7: memref<8x128xf32, #tpu.memory_space<vmem>>) attributes {dimension_semantics = [#tpu.dimension_semantics<parallel>], iteration_bounds = array<i64: 1>, scalar_prefetch = 0 : i64, scratch_operands = 0 : i64, tpu.core_type = #tpu.core_type<tc>, window_params = [{transform_indices = @transform_0, window_bounds = array<i64: 8, 128>}, {transform_indices = @transform_1, window_bounds = array<i64: 8, 128>}, {transform_indices = @transform_2, window_bounds = array<i64: 8, 128>}, {transform_indices = @transform_3, window_bounds = array<i64: 8, 128>}, {transform_indices = @transform_4, window_bounds = array<i64: 8, 128>}, {transform_indices = @transform_5, window_bounds = array<i64: 8, 128>}, {transform_indices = @transform_6, window_bounds = array<i64: 8, 128>}]} {
    %c0 = arith.constant 0 : index
    %c0_0 = arith.constant 0 : index
    %0 = vector.load %arg1[%c0, %c0_0] : memref<8x128xf32, #tpu.memory_space<vmem>>, vector<8x128xf32>
    %c0_1 = arith.constant 0 : index
    %c0_2 = arith.constant 0 : index
    %1 = vector.load %arg2[%c0_1, %c0_2] : memref<8x128xf32, #tpu.memory_space<vmem>>, vector<8x128xf32>
    %c0_3 = arith.constant 0 : index
    %c0_4 = arith.constant 0 : index
    %2 = vector.load %arg3[%c0_3, %c0_4] : memref<8x128xf32, #tpu.memory_space<vmem>>, vector<8x128xf32>
    %c0_5 = arith.constant 0 : index
    %c0_6 = arith.constant 0 : index
    %3 = vector.load %arg4[%c0_5, %c0_6] : memref<8x128xf32, #tpu.memory_space<vmem>>, vector<8x128xf32>
    %4 = arith.subf %0, %1 : vector<8x128xf32>
    %5 = arith.subf %2, %3 : vector<8x128xf32>
    %6 = arith.subf %4, %5 : vector<8x128xf32>
    %cst = arith.constant 1.000000e-01 : f32
    %7 = vector.broadcast %cst : f32 to vector<8x128xf32>
    %8 = arith.mulf %7, %6 : vector<8x128xf32>
    %cst_7 = arith.constant 0.000000e+00 : f32
    %9 = vector.broadcast %cst_7 : f32 to vector<8x128xf32>
    %10 = arith.minimumf %8, %9 : vector<8x128xf32>
    %11 = math.absf %8 : vector<8x128xf32>
    %cst_8 = arith.constant 0.000000e+00 : f32
    %12 = vector.broadcast %cst_8 : f32 to vector<8x128xf32>
    %13 = arith.subf %12, %11 : vector<8x128xf32>
    %14 = math.exp %13 : vector<8x128xf32>
    %15 = math.log1p %14 : vector<8x128xf32>
    %16 = arith.subf %10, %15 : vector<8x128xf32>
    %cst_9 = arith.constant 0.000000e+00 : f32
    %17 = vector.broadcast %cst_9 : f32 to vector<8x128xf32>
    %18 = arith.subf %17, %16 : vector<8x128xf32>
    %c0_10 = arith.constant 0 : index
    %c0_11 = arith.constant 0 : index
    %19 = vector.load %arg5[%c0_10, %c0_11] : memref<8x128xf32, #tpu.memory_space<vmem>>, vector<8x128xf32>
    tpu.vector_store %arg5[%c0_10, %c0_11], %18 {strides = array<i32>} : memref<8x128xf32, #tpu.memory_space<vmem>>, vector<8x128xf32>,
    %20 = arith.subf %0, %2 : vector<8x128xf32>
    %c0_12 = arith.constant 0 : index
    %c0_13 = arith.constant 0 : index
    %21 = vector.load %arg6[%c0_12, %c0_13] : memref<8x128xf32, #tpu.memory_space<vmem>>, vector<8x128xf32>
    tpu.vector_store %arg6[%c0_12, %c0_13], %20 {strides = array<i32>} : memref<8x128xf32, #tpu.memory_space<vmem>>, vector<8x128xf32>,
    %22 = arith.subf %1, %3 : vector<8x128xf32>
    %c0_14 = arith.constant 0 : index
    %c0_15 = arith.constant 0 : index
    %23 = vector.load %arg7[%c0_14, %c0_15] : memref<8x128xf32, #tpu.memory_space<vmem>>, vector<8x128xf32>
    tpu.vector_store %arg7[%c0_14, %c0_15], %22 {strides = array<i32>} : memref<8x128xf32, #tpu.memory_space<vmem>>, vector<8x128xf32>,
    return
  }
  func.func @transform_0(%arg0: i32) -> (i32, i32) {
    %c0_i32 = arith.constant 0 : i32
    %c0_i32_0 = arith.constant 0 : i32
    return %arg0, %c0_i32 : i32, i32
  }
  func.func @transform_1(%arg0: i32) -> (i32, i32) {
    %c0_i32 = arith.constant 0 : i32
    %c0_i32_0 = arith.constant 0 : i32
    return %arg0, %c0_i32 : i32, i32
  }
  func.func @transform_2(%arg0: i32) -> (i32, i32) {
    %c0_i32 = arith.constant 0 : i32
    %c0_i32_0 = arith.constant 0 : i32
    return %arg0, %c0_i32 : i32, i32
  }
  func.func @transform_3(%arg0: i32) -> (i32, i32) {
    %c0_i32 = arith.constant 0 : i32
    %c0_i32_0 = arith.constant 0 : i32
    return %arg0, %c0_i32 : i32, i32
  }
  func.func @transform_4(%arg0: i32) -> (i32, i32) {
    %c0_i32 = arith.constant 0 : i32
    %c0_i32_0 = arith.constant 0 : i32
    return %arg0, %c0_i32 : i32, i32
  }
  func.func @transform_5(%arg0: i32) -> (i32, i32) {
    %c0_i32 = arith.constant 0 : i32
    %c0_i32_0 = arith.constant 0 : i32
    return %arg0, %c0_i32 : i32, i32
  }
  func.func @transform_6(%arg0: i32) -> (i32, i32) {
    %c0_i32 = arith.constant 0 : i32
    %c0_i32_0 = arith.constant 0 : i32
    return %arg0, %c0_i32 : i32, i32
  }
}

</mosaic_0001>

<llo_original>
// kernel: tpu_custom_call.1
$region0: #{tpu_custom_call.1}
  #allocation0 [shape = 'u32[]', space=smem, size = 0x4, offset = 0x4, fixed_abs, tag = 'smem constant byte address 0x4 - core index']
  #allocation1 [shape = 'u32[144,128]{1,0:T(1,128)}', space=vmem, size = 0x12000, scoped, tag = 'internal scratch']
  %s0 = inlined_call_operand.hbm [shape: f32[8,128], index: 0, kind: input, shape index: {}]
  %s1 = inlined_call_operand.hbm [shape: f32[8,128], index: 1, kind: input, shape index: {}]
  %s2 = inlined_call_operand.hbm [shape: f32[8,128], index: 2, kind: input, shape index: {}]
  %s3 = inlined_call_operand.vmem [shape: f32[8,128], index: 3, kind: input, shape index: {}]
  %s4 = inlined_call_operand.hbm [shape: f32[8,128], index: 4, kind: output, shape index: {0}]
  %s5 = inlined_call_operand.hbm [shape: f32[8,128], index: 5, kind: output, shape index: {1}]
  %s6 = inlined_call_operand.hbm [shape: f32[8,128], index: 6, kind: output, shape index: {2}]
  %7 = xla_tuple %s4, %s5, %s6
  %s8 = sld [smem:[#allocation0]]
  $region54: #{tpu_custom_call.1} parent=0
    _
  %s10 = ssub.s32 1, %s8
  %s11 = scalar_select 0, %s10, %s8
  $region1: #{tpu_custom_call.1} parent=0
    #allocation2 [shape = 'u8[4096]{0}', space=vmem, size = 0x1000, scoped, tag = 'input window, operand 0, single buffered']
    #allocation3 [shape = 's32[1]{0}', space=sflag, size = 0x4, scoped, tag = 'scoped memory for tpu_custom_call.1']
    #allocation4 [shape = 's32[1]{0}', space=sflag, size = 0x4, scoped, tag = 'scoped memory for tpu_custom_call.1']
    #allocation5 [shape = 'u8[4096]{0}', space=vmem, size = 0x1000, scoped, tag = 'input window, operand 1, single buffered']
    #allocation6 [shape = 's32[1]{0}', space=sflag, size = 0x4, scoped, tag = 'scoped memory for tpu_custom_call.1']
    #allocation7 [shape = 'u8[4096]{0}', space=vmem, size = 0x1000, scoped, tag = 'input window, operand 2, single buffered']
    #allocation8 [shape = 'u8[4096]{0}', space=vmem, size = 0x1000, scoped, tag = 'output window, operand 0, single buffered']
    #allocation9 [shape = 'u8[4096]{0}', space=vmem, size = 0x1000, scoped, tag = 'output window, operand 1, single buffered']
    #allocation10 [shape = 's32[1]{0}', space=sflag, size = 0x4, scoped, tag = 'scoped memory for tpu_custom_call.1']
    #allocation11 [shape = 'u8[4096]{0}', space=vmem, size = 0x1000, scoped, tag = 'output window, operand 2, single buffered']
    %12 = vsyncpa [#allocation3], 0
    %13 = vsyncpa [#allocation6], 0
    %14 = vsyncpa [#allocation4], 0
    %15 = vsyncpa [#allocation10], 0
    // Predicated region
    $region2: #{tpu_custom_call.1} parent=1 // pred_check
      _
    $region3: #{tpu_custom_call.1} parent=1 // pred_check_branch
      %17 = sbr.rel (0) target = $region5
    $region4: #{tpu_custom_call.1} parent=1 // pred_region
      %s19 = ssub.s32 128, 128
      %20 = vsyncadd [#allocation3], %s19
      %s22 = sshll.u32 [#allocation2], 4
      %s23 = int_to_ptr.vmem [resolvable:$true] %s22
      %25 = dma.hbm_to_vmem [thread:$0]  %s0, 128, %s23, [#allocation3]
    $region5: #{tpu_custom_call.1} parent=1 // pred_fallthru
      _
    // Predicated region
    $region6: #{tpu_custom_call.1} parent=1 // pred_check
      _
    $region7: #{tpu_custom_call.1} parent=1 // pred_check_branch
      %27 = sbr.rel (0) target = $region9
    $region8: #{tpu_custom_call.1} parent=1 // pred_region
      %s29 = ssub.s32 128, 128
      %30 = vsyncadd [#allocation6], %s29
      %s32 = sshll.u32 [#allocation5], 4
      %s33 = int_to_ptr.vmem [resolvable:$true] %s32
      %35 = dma.hbm_to_vmem [thread:$0]  %s1, 128, %s33, [#allocation6]
    $region9: #{tpu_custom_call.1} parent=1 // pred_fallthru
      _
    // Predicated region
    $region10: #{tpu_custom_call.1} parent=1 // pred_check
      _
    $region11: #{tpu_custom_call.1} parent=1 // pred_check_branch
      %37 = sbr.rel (0) target = $region13
    $region12: #{tpu_custom_call.1} parent=1 // pred_region
      %s39 = ssub.s32 128, 128
      %40 = vsyncadd [#allocation6], %s39
      %s42 = sshll.u32 [#allocation7], 4
      %s43 = int_to_ptr.vmem [resolvable:$true] %s42
      %45 = dma.hbm_to_vmem [thread:$0]  %s2, 128, %s43, [#allocation6]
    $region13: #{tpu_custom_call.1} parent=1 // pred_fallthru
      _
    // Predicated region
    $region14: #{tpu_custom_call.1} parent=1 // pred_check
      _
    $region15: #{tpu_custom_call.1} parent=1 // pred_check_branch
      %47 = sbr.rel (0) target = $region17
    $region16: #{tpu_custom_call.1} parent=1 // pred_region
      _
    $region17: #{tpu_custom_call.1} parent=1 // pred_fallthru
      _
    // Predicated region
    $region18: #{tpu_custom_call.1} parent=1 // pred_check
      _
    $region19: #{tpu_custom_call.1} parent=1 // pred_check_branch
      %49 = sbr.rel (0) target = $region21
    $region20: #{tpu_custom_call.1} parent=1 // pred_region
      %50 = dma.done [#allocation3], 128
    $region21: #{tpu_custom_call.1} parent=1 // pred_fallthru
      _
    // Predicated region
    $region22: #{tpu_custom_call.1} parent=1 // pred_check
      _
    $region23: #{tpu_custom_call.1} parent=1 // pred_check_branch
      %52 = sbr.rel (0) target = $region25
    $region24: #{tpu_custom_call.1} parent=1 // pred_region
      %53 = dma.done [#allocation6], 128
    $region25: #{tpu_custom_call.1} parent=1 // pred_fallthru
      _
    // Predicated region
    $region26: #{tpu_custom_call.1} parent=1 // pred_check
      _
    $region27: #{tpu_custom_call.1} parent=1 // pred_check_branch
      %55 = sbr.rel (0) target = $region29
    $region28: #{tpu_custom_call.1} parent=1 // pred_region
      %56 = dma.done [#allocation6], 128
    $region29: #{tpu_custom_call.1} parent=1 // pred_fallthru
      _
    %v57 = vld [vmem:[#allocation2] sm:$0xff]
    %v58 = vld [vmem:[#allocation5] sm:$0xff]
    %v59 = vld [vmem:[#allocation7] sm:$0xff]
    %v60 = vld [vmem:[%s3] sm:$0xff]
    %v61 = vsub.f32 %v57, %v58
    %v62 = vsub.f32 %v59, %v60
    %v63 = vsub.f32 %v61, %v62
    %v64 = vmul.f32 %v63, 0.1
    %v65 = vmin.f32 %v64, 0.0
    %v66 = vand.u32 2147483647, %v64
    %v67 = vsub.f32 0.0, %v66
    %v68 = vmul.f32 %v67, 1.442695
    %v69 = vpow.pop %v68
    %v70 = vadd.f32 %v69, 1.0
    %v71 = vlog2.pop %v70
    %v72 = vmul.f32 %v71, 0.6931472
    %v73 = vmul.f32 -0.5, %v69
    %v74 = vadd.f32 %v73, 1.0
    %v75 = vmul.f32 %v74, %v69
    %v76 = vand.u32 2147483647, %v69
    %vm77 = vcmp.lt.f32.partialorder %v76, 0.0004427343
    %v78 = vsel %vm77, %v75, %v72
    %v79 = vsub.f32 %v65, %v78
    %v80 = vsub.f32 0.0, %v79
    %81 = vst [vmem:[#allocation8] sm:$0xff] %v80
    %v82 = vsub.f32 %v57, %v59
    %83 = vst [vmem:[#allocation9] sm:$0xff] %v82
    %v84 = vsub.f32 %v58, %v60
    %85 = vst [vmem:[#allocation11] sm:$0xff] %v84
    // Predicated region
    $region30: #{tpu_custom_call.1} parent=1 // pred_check
      _
    $region31: #{tpu_custom_call.1} parent=1 // pred_check_branch
      %87 = sbr.rel (0) target = $region33
    $region32: #{tpu_custom_call.1} parent=1 // pred_region
      %s89 = ssub.s32 128, 128
      %90 = vsyncadd [#allocation4], %s89
      %s92 = sshll.u32 [#allocation8], 4
      %s93 = int_to_ptr.vmem [resolvable:$true] %s92
      %95 = dma.vmem_to_hbm [thread:$0]  %s93, 128, %s4, [#allocation4]
    $region33: #{tpu_custom_call.1} parent=1 // pred_fallthru
      _
    // Predicated region
    $region34: #{tpu_custom_call.1} parent=1 // pred_check
      _
    $region35: #{tpu_custom_call.1} parent=1 // pred_check_branch
      %97 = sbr.rel (0) target = $region37
    $region36: #{tpu_custom_call.1} parent=1 // pred_region
      %s99 = ssub.s32 128, 128
      %100 = vsyncadd [#allocation10], %s99
      %s102 = sshll.u32 [#allocation9], 4
      %s103 = int_to_ptr.vmem [resolvable:$true] %s102
      %105 = dma.vmem_to_hbm [thread:$0]  %s103, 128, %s5, [#allocation10]
    $region37: #{tpu_custom_call.1} parent=1 // pred_fallthru
      _
    // Predicated region
    $region38: #{tpu_custom_call.1} parent=1 // pred_check
      _
    $region39: #{tpu_custom_call.1} parent=1 // pred_check_branch
      %107 = sbr.rel (0) target = $region41
    $region40: #{tpu_custom_call.1} parent=1 // pred_region
      %s109 = ssub.s32 128, 128
      %110 = vsyncadd [#allocation10], %s109
      %s112 = sshll.u32 [#allocation11], 4
      %s113 = int_to_ptr.vmem [resolvable:$true] %s112
      %115 = dma.vmem_to_hbm [thread:$0]  %s113, 128, %s6, [#allocation10]
    $region41: #{tpu_custom_call.1} parent=1 // pred_fallthru
      _
    // Predicated region
    $region42: #{tpu_custom_call.1} parent=1 // pred_check
      _
    $region43: #{tpu_custom_call.1} parent=1 // pred_check_branch
      %117 = sbr.rel (0) target = $region45
    $region44: #{tpu_custom_call.1} parent=1 // pred_region
      %118 = dma.done [#allocation4], 128
    $region45: #{tpu_custom_call.1} parent=1 // pred_fallthru
      _
    // Predicated region
    $region46: #{tpu_custom_call.1} parent=1 // pred_check
      _
    $region47: #{tpu_custom_call.1} parent=1 // pred_check_branch
      %120 = sbr.rel (0) target = $region49
    $region48: #{tpu_custom_call.1} parent=1 // pred_region
      %121 = dma.done [#allocation10], 128
    $region49: #{tpu_custom_call.1} parent=1 // pred_fallthru
      _
    // Predicated region
    $region50: #{tpu_custom_call.1} parent=1 // pred_check
      _
    $region51: #{tpu_custom_call.1} parent=1 // pred_check_branch
      %123 = sbr.rel (0) target = $region53
    $region52: #{tpu_custom_call.1} parent=1 // pred_region
      %124 = dma.done [#allocation10], 128
    $region53: #{tpu_custom_call.1} parent=1 // pred_fallthru
      _
    %125 = vsyncpa [#allocation3], 1
    %126 = vsyncpa [#allocation6], 1
    %127 = vsyncpa [#allocation4], 1
    %128 = vsyncpa [#allocation10], 1

</llo_original>
